<compile_context>
chip_gen: v5e
topology: v5e:2x2
jax: 0.10.0
libtpu: 0.0.40
codegen_flags: <defaults>
</compile_context>

<pallas_src>
import functools

import jax
import jax.numpy as jnp
from jax.experimental import pallas as pl
from jax.experimental.pallas import tpu as pltpu


def _gcn2_kernel(adj_ref, x_ref, w1_ref, b1_ref, w2_ref, b2_ref, o_ref, *,
                 use_bf16_matmul):
    # adj_ref: (bb, N, N)  bf16 (0/1, exact) or f32
    # x_ref  : (bb, N, Fin) f32
    # w1_ref : (Fin, H)   b1_ref: (1, H)
    # w2_ref : (H, Fout)  b2_ref: (1, Fout)
    # o_ref  : (bb, N, Fout)
    adj = adj_ref[...].astype(jnp.float32)
    x = x_ref[...]
    bb, n, _ = x.shape

    # Degree normalization of adj_hat = adj + I, computed ONCE and reused by
    # both layers:  D^-1/2 (A + I) D^-1/2 @ f  ==  (d d^T . A) @ f + d^2 . f,
    # so the identity matrix is never materialized.
    deg = jnp.sum(adj, axis=2) + 1.0                                # (bb, N)
    dinv = jnp.where(deg > 0.0,
                     jax.lax.rsqrt(jnp.maximum(deg, 1e-30)), 0.0)   # matches ref's inf->0
    d_col = dinv[:, :, None]                                        # (bb, N, 1)
    d_row = dinv[:, None, :]                                        # (bb, 1, N)
    d2 = d_col * d_col
    norm_adj = (d_col * adj) * d_row                                # (bb, N, N)

    adj_op = norm_adj.astype(jnp.bfloat16) if use_bf16_matmul else norm_adj

    def aggregate(feat):
        rhs = feat.astype(jnp.bfloat16) if use_bf16_matmul else feat
        agg = jnp.einsum('bij,bjf->bif', adj_op, rhs,
                         preferred_element_type=jnp.float32)
        return agg + d2 * feat                                      # (bb, N, F)

    def linear(feat3d, w_ref, b_ref):
        # Flatten (bb, N, F) -> (bb*N, F): F stays in the lane dim and N (a
        # multiple of 8) stays sublane-aligned, so this is a relabel, not a
        # VMEM copy; it gives the MXU a real M = bb*N dimension.
        f = feat3d.shape[-1]
        lhs = feat3d.reshape(bb * n, f)
        w = w_ref[...]
        if use_bf16_matmul:
            lhs = lhs.astype(jnp.bfloat16)
            w = w.astype(jnp.bfloat16)
        out = jnp.dot(lhs, w, preferred_element_type=jnp.float32) + b_ref[...]
        return out.reshape(bb, n, -1)

    # Layer 1: h = relu(agg(x) @ W1 + b1)  -- h never leaves VMEM.
    h = jnp.maximum(linear(aggregate(x), w1_ref, b1_ref), 0.0)      # (bb, N, H)
    # Layer 2 (no relu).
    y = linear(aggregate(h), w2_ref, b2_ref)                        # (bb, N, Fout)
    o_ref[...] = y.astype(o_ref.dtype)


def _pick_block_b(B, N, Fin, H, Fout, *, budget_bytes=24 * (1 << 20),
                  min_steps=2):
    """Largest divisor of B whose per-step VMEM estimate fits `budget_bytes`
    while leaving >= `min_steps` grid steps for pipelining (preferring an even
    step count so both v7x TensorCores get work)."""

    def per_step_bytes(bb):
        adj_io = 2 * bb * N * N * 2                       # bf16 adj, double-buffered
        x_io = 2 * bb * N * Fin * 4
        out_io = 2 * bb * N * Fout * 4
        w_io = 2 * (Fin * H + H + H * Fout + Fout) * 4    # weights, double-buffered
        # Live f32 intermediates: adj f32 copy, norm_adj, agg, h, y, d's.
        live = bb * N * (2 * N + Fin + 2 * H + 2 * Fout + 8) * 4
        return adj_io + x_io + out_io + w_io + live

    divisors = sorted((d for d in range(1, B + 1) if B % d == 0), reverse=True)
    fitting = [bb for bb in divisors if per_step_bytes(bb) <= budget_bytes]
    if not fitting:
        return 1, per_step_bytes(1)
    for pred in (lambda bb: B // bb >= min_steps and (B // bb) % 2 == 0,
                 lambda bb: B // bb >= min_steps,
                 lambda bb: True):
        cands = [bb for bb in fitting if pred(bb)]
        if cands:
            bb = cands[0]
            return bb, per_step_bytes(bb)
    return 1, per_step_bytes(1)


@functools.partial(jax.jit,
                   static_argnames=("block_b", "use_bf16_matmul", "binary_adj"))
def gcn_forward(x, adj, w1, b1, w2, b2, *, block_b=None,
                use_bf16_matmul=False, binary_adj=True):
    """Fused 2-layer GCN forward.

    x: (B, N, Fin), adj: (B, N, N), w1: (Fin, H), b1: (H,),
    w2: (H, Fout), b2: (Fout,).  Returns (B, N, Fout) float32.
    """
    B, N, Fin = x.shape
    H = w1.shape[1]
    Fout = w2.shape[1]

    if block_b is None:
        block_b, est_bytes = _pick_block_b(B, N, Fin, H, Fout)
    else:
        _, est_bytes = _pick_block_b(B, N, Fin, H, Fout)
    assert B % block_b == 0, "block_b must divide the batch size"
    nb = B // block_b

    # Explicit scoped-VMEM limit derived from the per-step estimate; capped
    # below v7x's 64 MiB physical so double-buffering survives on every chip.
    vmem_limit = int(min(max(2 * est_bytes, 32 * (1 << 20)), 48 * (1 << 20)))

    # adj is the dominant input stream: store it in HBM as bf16 when it is a
    # 0/1 adjacency (exact), halving its DMA and its double-buffered VMEM.
    adj_in = adj.astype(jnp.bfloat16) if binary_adj else adj.astype(jnp.float32)

    w1f = w1.astype(jnp.float32)
    w2f = w2.astype(jnp.float32)
    b1r = b1.astype(jnp.float32).reshape(1, H)
    b2r = b2.astype(jnp.float32).reshape(1, Fout)

    kernel = functools.partial(_gcn2_kernel, use_bf16_matmul=use_bf16_matmul)

    # NOTE: the weight/bias blocks have constant index_maps; their (tiny)
    # double-buffer cost is included in est_bytes above.
    # NOTE: for very large N, add a contraction-tiling ("arbitrary") grid axis
    # over adj columns instead of keeping the whole (block_b, N, N) block
    # resident; not needed at these shapes.
    out = pl.pallas_call(
        kernel,
        out_shape=jax.ShapeDtypeStruct((B, N, Fout), jnp.float32),
        grid_spec=pltpu.PrefetchScalarGridSpec(
            num_scalar_prefetch=0,
            grid=(nb,),
            in_specs=[
                pl.BlockSpec((block_b, N, N), lambda i: (i, 0, 0)),
                pl.BlockSpec((block_b, N, Fin), lambda i: (i, 0, 0)),
                pl.BlockSpec((Fin, H), lambda i: (0, 0)),
                pl.BlockSpec((1, H), lambda i: (0, 0)),
                pl.BlockSpec((H, Fout), lambda i: (0, 0)),
                pl.BlockSpec((1, Fout), lambda i: (0, 0)),
            ],
            out_specs=pl.BlockSpec((block_b, N, Fout), lambda i: (i, 0, 0)),
        ),
        compiler_params=pltpu.CompilerParams(
            dimension_semantics=("parallel",),
            vmem_limit_bytes=vmem_limit),
    )(adj_in, x, w1f, b1r, w2f, b2r)

    return out


def init_gcn_params(key, in_features, hidden_features, out_features):
    """Deterministic parameter init for a 2-layer GCN (matches module shapes)."""
    k1, k2, k3, k4 = jax.random.split(key, 4)
    w1 = jax.random.uniform(k1, (in_features, hidden_features), jnp.float32,
                            -1.0, 1.0) / jnp.sqrt(in_features)
    b1 = jax.random.uniform(k2, (hidden_features,), jnp.float32,
                            -1.0, 1.0) / jnp.sqrt(in_features)
    w2 = jax.random.uniform(k3, (hidden_features, out_features), jnp.float32,
                            -1.0, 1.0) / jnp.sqrt(hidden_features)
    b2 = jax.random.uniform(k4, (out_features,), jnp.float32,
                            -1.0, 1.0) / jnp.sqrt(hidden_features)
    return (w1, b1), (w2, b2)


def gcn_reference(x, adj, w1, b1, w2, b2):
    """Pure-JAX mirror of the PyTorch GCN forward (for a sanity check)."""
    B, N, _ = x.shape
    eye = jnp.eye(N, dtype=jnp.float32)

    def layer(h, w, b, relu):
        adj_hat = adj + eye
        deg = jnp.sum(adj_hat, axis=2)
        d = jnp.where(deg > 0.0, deg ** -0.5, 0.0)
        norm = d[:, :, None] * adj_hat * d[:, None, :]
        agg = jnp.einsum('bij,bjf->bif', norm, h)
        out = agg @ w + b
        return jnp.maximum(out, 0.0) if relu else out

    h = layer(x, w1, b1, True)
    return layer(h, w2, b2, False)


if __name__ == "__main__":
    key = jax.random.PRNGKey(0)
    kx, kadj, kp = jax.random.split(key, 3)

    B, N = 2, 16
    in_features, hidden_features, out_features = 8, 32, 8

    x = jax.random.normal(kx, (B, N, in_features), jnp.float32)
    # Random symmetric 0/1 adjacency without self-loops.
    a = (jax.random.uniform(kadj, (B, N, N)) > 0.5).astype(jnp.float32)
    adj = jnp.maximum(a, jnp.transpose(a, (0, 2, 1)))
    adj = adj * (1.0 - jnp.eye(N, dtype=jnp.float32)[None])

    (w1, b1), (w2, b2) = init_gcn_params(kp, in_features, hidden_features,
                                         out_features)

    # Default path: f32 matmuls, bf16 adjacency storage (exact for 0/1 adj).
    out = gcn_forward(x, adj, w1, b1, w2, b2)
    jax.block_until_ready(out)
    assert out.shape == (B, N, out_features)

    ref = gcn_reference(x, adj, w1, b1, w2, b2)
    assert jnp.allclose(out, ref, atol=1e-3, rtol=1e-3), "mismatch vs reference"

    # bf16-MXU path (feature operands rounded -> looser tolerance).
    out_bf16 = gcn_forward(x, adj, w1, b1, w2, b2, use_bf16_matmul=True)
    jax.block_until_ready(out_bf16)
    assert jnp.allclose(out_bf16, ref, atol=5e-2, rtol=5e-2), \
        "mismatch vs reference (bf16 path)"

    # TODO(synk): dropout layers are identity at inference and are omitted.
    # TODO(synk): only the default model_type='gcn' path is implemented; the
    #             GAT / GAT_GCN branches of `Model` are not translated here.
    print("KERNEL_OK")
</pallas_src>

<mosaic_0001>
module attributes {stable_mosaic.version = 11 : i64} {
  func.func @_gcn2_kernel(%arg0: i32, %arg1: memref<1x16x16xbf16, #tpu.memory_space<vmem>>, %arg2: memref<1x16x8xf32, #tpu.memory_space<vmem>>, %arg3: memref<8x32xf32, #tpu.memory_space<vmem>>, %arg4: memref<1x32xf32, #tpu.memory_space<vmem>>, %arg5: memref<32x8xf32, #tpu.memory_space<vmem>>, %arg6: memref<1x8xf32, #tpu.memory_space<vmem>>, %arg7: memref<1x16x8xf32, #tpu.memory_space<vmem>>) attributes {dimension_semantics = [#tpu.dimension_semantics<parallel>], iteration_bounds = array<i64: 2>, scalar_prefetch = 0 : i64, scratch_operands = 0 : i64, tpu.core_type = #tpu.core_type<tc>, window_params = [{transform_indices = @transform_0, window_bounds = array<i64: 1, 16, 16>}, {transform_indices = @transform_1, window_bounds = array<i64: 1, 16, 8>}, {pipeline_mode = #tpu.pipeline_mode<synchronous>, transform_indices = @transform_2, window_bounds = array<i64: 8, 32>}, {pipeline_mode = #tpu.pipeline_mode<synchronous>, transform_indices = @transform_3, window_bounds = array<i64: 1, 32>}, {pipeline_mode = #tpu.pipeline_mode<synchronous>, transform_indices = @transform_4, window_bounds = array<i64: 32, 8>}, {pipeline_mode = #tpu.pipeline_mode<synchronous>, transform_indices = @transform_5, window_bounds = array<i64: 1, 8>}, {transform_indices = @transform_6, window_bounds = array<i64: 1, 16, 8>}]} {
    %c0 = arith.constant 0 : index
    %c0_0 = arith.constant 0 : index
    %c0_1 = arith.constant 0 : index
    %0 = vector.load %arg1[%c0, %c0_0, %c0_1] : memref<1x16x16xbf16, #tpu.memory_space<vmem>>, vector<1x16x16xbf16>
    %1 = arith.extf %0 : vector<1x16x16xbf16> to vector<1x16x16xf32>
    %c0_2 = arith.constant 0 : index
    %c0_3 = arith.constant 0 : index
    %c0_4 = arith.constant 0 : index
    %2 = vector.load %arg2[%c0_2, %c0_3, %c0_4] : memref<1x16x8xf32, #tpu.memory_space<vmem>>, vector<1x16x8xf32>
    %cst = arith.constant dense<0.000000e+00> : vector<1x16xf32>
    %3 = vector.multi_reduction <add>, %1, %cst [2] : vector<1x16x16xf32> to vector<1x16xf32>
    %cst_5 = arith.constant 1.000000e+00 : f32
    %4 = vector.broadcast %cst_5 : f32 to vector<1x16xf32>
    %5 = arith.addf %3, %4 : vector<1x16xf32>
    %cst_6 = arith.constant 0.000000e+00 : f32
    %6 = vector.broadcast %cst_6 : f32 to vector<1x16xf32>
    %7 = arith.cmpf ogt, %5, %6 : vector<1x16xf32>
    %cst_7 = arith.constant 1.000000e-30 : f32
    %8 = vector.broadcast %cst_7 : f32 to vector<1x16xf32>
    %9 = arith.maximumf %5, %8 : vector<1x16xf32>
    %10 = math.rsqrt %9 : vector<1x16xf32>
    %cst_8 = arith.constant 0.000000e+00 : f32
    %11 = vector.broadcast %cst_8 : f32 to vector<1x16xf32>
    %12 = arith.select %7, %10, %11 : vector<1x16xi1>, vector<1x16xf32>
    %13 = vector.shape_cast %12 : vector<1x16xf32> to vector<1x16x1xf32>
    %14 = vector.shape_cast %12 : vector<1x16xf32> to vector<1x1x16xf32>
    %15 = arith.mulf %13, %13 : vector<1x16x1xf32>
    %16 = vector.broadcast %13 : vector<1x16x1xf32> to vector<1x16x16xf32>
    %17 = arith.mulf %16, %1 : vector<1x16x16xf32>
    %18 = vector.broadcast %14 : vector<1x1x16xf32> to vector<1x16x16xf32>
    %19 = arith.mulf %17, %18 : vector<1x16x16xf32>
    "tpu.trace_start"() <{level = 10 : i32, message = "bij,bjf->bif"}> : () -> ()
    %cst_9 = arith.constant dense<0.000000e+00> : vector<1x16x8xf32>
    %20 = tpu.matmul %19, %2, %cst_9 {dimension_numbers = #tpu.dot_dimension_numbers<[2], [1], [1], [2], [0, 0, 0, 1, 1, 2], [0], [0]>} : vector<1x16x16xf32>, vector<1x16x8xf32>, vector<1x16x8xf32> -> vector<1x16x8xf32>
    "tpu.trace_stop"() : () -> ()
    %21 = vector.broadcast %15 : vector<1x16x1xf32> to vector<1x16x8xf32>
    %22 = arith.mulf %21, %2 : vector<1x16x8xf32>
    %23 = arith.addf %20, %22 : vector<1x16x8xf32>
    %24 = vector.shape_cast %23 : vector<1x16x8xf32> to vector<16x8xf32>
    %c0_10 = arith.constant 0 : index
    %c0_11 = arith.constant 0 : index
    %25 = vector.load %arg3[%c0_10, %c0_11] : memref<8x32xf32, #tpu.memory_space<vmem>>, vector<8x32xf32>
    %cst_12 = arith.constant dense<0.000000e+00> : vector<16x32xf32>
    %26 = tpu.matmul %24, %25, %cst_12 {dimension_numbers = #tpu.dot_dimension_numbers<[1], [0], [0], [1], [0, 0, 1, 1], [], []>} : vector<16x8xf32>, vector<8x32xf32>, vector<16x32xf32> -> vector<16x32xf32>
    %c0_13 = arith.constant 0 : index
    %c0_14 = arith.constant 0 : index
    %27 = vector.load %arg4[%c0_13, %c0_14] : memref<1x32xf32, #tpu.memory_space<vmem>>, vector<1x32xf32>
    %28 = vector.broadcast %27 : vector<1x32xf32> to vector<16x32xf32>
    %29 = arith.addf %26, %28 : vector<16x32xf32>
    %30 = vector.shape_cast %29 : vector<16x32xf32> to vector<1x16x32xf32>
    %cst_15 = arith.constant 0.000000e+00 : f32
    %31 = vector.broadcast %cst_15 : f32 to vector<1x16x32xf32>
    %32 = arith.maximumf %30, %31 : vector<1x16x32xf32>
    "tpu.trace_start"() <{level = 10 : i32, message = "bij,bjf->bif"}> : () -> ()
    %cst_16 = arith.constant dense<0.000000e+00> : vector<1x16x32xf32>
    %33 = tpu.matmul %19, %32, %cst_16 {dimension_numbers = #tpu.dot_dimension_numbers<[2], [1], [1], [2], [0, 0, 0, 1, 1, 2], [0], [0]>} : vector<1x16x16xf32>, vector<1x16x32xf32>, vector<1x16x32xf32> -> vector<1x16x32xf32>
    "tpu.trace_stop"() : () -> ()
    %34 = vector.broadcast %15 : vector<1x16x1xf32> to vector<1x16x32xf32>
    %35 = arith.mulf %34, %32 : vector<1x16x32xf32>
    %36 = arith.addf %33, %35 : vector<1x16x32xf32>
    %37 = vector.shape_cast %36 : vector<1x16x32xf32> to vector<16x32xf32>
    %c0_17 = arith.constant 0 : index
    %c0_18 = arith.constant 0 : index
    %38 = vector.load %arg5[%c0_17, %c0_18] : memref<32x8xf32, #tpu.memory_space<vmem>>, vector<32x8xf32>
    %cst_19 = arith.constant dense<0.000000e+00> : vector<16x8xf32>
    %39 = tpu.matmul %37, %38, %cst_19 {dimension_numbers = #tpu.dot_dimension_numbers<[1], [0], [0], [1], [0, 0, 1, 1], [], []>} : vector<16x32xf32>, vector<32x8xf32>, vector<16x8xf32> -> vector<16x8xf32>
    %c0_20 = arith.constant 0 : index
    %c0_21 = arith.constant 0 : index
    %40 = vector.load %arg6[%c0_20, %c0_21] : memref<1x8xf32, #tpu.memory_space<vmem>>, vector<1x8xf32>
    %41 = vector.broadcast %40 : vector<1x8xf32> to vector<16x8xf32>
    %42 = arith.addf %39, %41 : vector<16x8xf32>
    %43 = vector.shape_cast %42 : vector<16x8xf32> to vector<1x16x8xf32>
    %c0_22 = arith.constant 0 : index
    %c0_23 = arith.constant 0 : index
    %c0_24 = arith.constant 0 : index
    %44 = vector.load %arg7[%c0_22, %c0_23, %c0_24] : memref<1x16x8xf32, #tpu.memory_space<vmem>>, vector<1x16x8xf32>
    tpu.vector_store %arg7[%c0_22, %c0_23, %c0_24], %43 {strides = array<i32>} : memref<1x16x8xf32, #tpu.memory_space<vmem>>, vector<1x16x8xf32>,
    return
  }
  func.func @transform_0(%arg0: i32) -> (i32, i32, i32) {
    %c0_i32 = arith.constant 0 : i32
    %c0_i32_0 = arith.constant 0 : i32
    %c0_i32_1 = arith.constant 0 : i32
    return %arg0, %c0_i32, %c0_i32_0 : i32, i32, i32
  }
  func.func @transform_1(%arg0: i32) -> (i32, i32, i32) {
    %c0_i32 = arith.constant 0 : i32
    %c0_i32_0 = arith.constant 0 : i32
    %c0_i32_1 = arith.constant 0 : i32
    return %arg0, %c0_i32, %c0_i32_0 : i32, i32, i32
  }
  func.func @transform_2(%arg0: i32) -> (i32, i32) {
    %c0_i32 = arith.constant 0 : i32
    %c0_i32_0 = arith.constant 0 : i32
    %c0_i32_1 = arith.constant 0 : i32
    return %c0_i32, %c0_i32_0 : i32, i32
  }
  func.func @transform_3(%arg0: i32) -> (i32, i32) {
    %c0_i32 = arith.constant 0 : i32
    %c0_i32_0 = arith.constant 0 : i32
    %c0_i32_1 = arith.constant 0 : i32
    return %c0_i32, %c0_i32_0 : i32, i32
  }
  func.func @transform_4(%arg0: i32) -> (i32, i32) {
    %c0_i32 = arith.constant 0 : i32
    %c0_i32_0 = arith.constant 0 : i32
    %c0_i32_1 = arith.constant 0 : i32
    return %c0_i32, %c0_i32_0 : i32, i32
  }
  func.func @transform_5(%arg0: i32) -> (i32, i32) {
    %c0_i32 = arith.constant 0 : i32
    %c0_i32_0 = arith.constant 0 : i32
    %c0_i32_1 = arith.constant 0 : i32
    return %c0_i32, %c0_i32_0 : i32, i32
  }
  func.func @transform_6(%arg0: i32) -> (i32, i32, i32) {
    %c0_i32 = arith.constant 0 : i32
    %c0_i32_0 = arith.constant 0 : i32
    %c0_i32_1 = arith.constant 0 : i32
    return %arg0, %c0_i32, %c0_i32_0 : i32, i32, i32
  }
}

</mosaic_0001>

<llo_original>
// kernel: gcn_forward.1
$region0: #{gcn_forward.1}
  #allocation0 [shape = 'u32[]', space=smem, size = 0x4, offset = 0x4, fixed_abs, tag = 'smem constant byte address 0x4 - core index']
  #allocation1 [shape = 'u32[72,128]{1,0:T(1,128)}', space=vmem, size = 0x9000, scoped, tag = 'internal scratch']
  %s0 = inlined_call_operand.vmem [shape: bf16[2,16,16], index: 0, kind: input, shape index: {}]
  %s1 = inlined_call_operand.vmem [shape: f32[2,16,8], index: 1, kind: input, shape index: {}]
  %s2 = inlined_call_operand.vmem [shape: f32[8,32], index: 2, kind: input, shape index: {}]
  %s3 = inlined_call_operand.vmem [shape: f32[1,32], index: 3, kind: input, shape index: {}]
  %s4 = inlined_call_operand.vmem [shape: f32[32,8], index: 4, kind: input, shape index: {}]
  %s5 = inlined_call_operand.vmem [shape: f32[1,8], index: 5, kind: input, shape index: {}]
  %s6 = inlined_call_operand.vmem [shape: f32[2,16,8], index: 6, kind: output, shape index: {}]
  %s7 = sld [smem:[#allocation0]]
  $region57: #{gcn_forward.1} parent=0
    _
  %s9 = ssub.s32 1, %s7
  %s10 = scalar_select 0, %s9, %s7
  loop: start=0, step=1, limit=4
  $region2: #{gcn_forward.1} parent=0 // loop_pre_header
    _
  $region3: #{gcn_forward.1} parent=0 // loop_header
    %s12 = sphi 0, %s16
    %p13 = scmp.ge.s32.totalorder %s12, 4
    %s22 = sphi 0, %s24
    %s25 = sphi 0, %s22
    %s26 = sphi 0, %s25
    %s42 = sphi 0, %s26
    %s48 = sphi 0, %s50
    %s51 = sphi 0, %s48
    %s52 = sphi 0, %s51
    %s68 = sphi 0, %s52
    %s72 = sphi 0, %s72
    %s74 = sphi 0, %s72
    %s75 = sphi 0, %s74
    %s89 = sphi 0, %s75
    %s93 = sphi 0, %s93
    %s95 = sphi 0, %s93
    %s96 = sphi 0, %s95
    %s110 = sphi 0, %s96
    %s114 = sphi 0, %s114
    %s116 = sphi 0, %s114
    %s117 = sphi 0, %s116
    %s131 = sphi 0, %s117
    %s135 = sphi 0, %s135
    %s137 = sphi 0, %s135
    %s138 = sphi 0, %s137
    %s152 = sphi 0, %s138
    %s158 = sphi 0, %s160
    %s161 = sphi 0, %s158
    %s162 = sphi 0, %s161
    %s178 = sphi 0, %s162
  $region4: #{gcn_forward.1} parent=0 // loop_header_branch
    %15 = sbr.rel (%p13) target = $region8
  $region5: #{gcn_forward.1} parent=0 // loop_body
    %s17 = ssub.s32 %s12, 1
    %s18 = ssub.s32 %s12, 2
    %s19 = sadd.s32 %s12, 1
    %s20 = ssub.s32 %s12, %s19
    %p21 = scmp.eq.s32.totalorder %s20, 0
    %s23 = sadd.s32 %s22, 1
    %s24 = scalar_select %p21, %s22, %s23
    %p27 = pneg %p21
    %p28 = scmp.eq.s32.totalorder %s12, 1
    %p29 = por %p27, %p28
    %p30 = scmp.ne.s32.totalorder %s22, %s25
    %p31 = scmp.eq.s32.totalorder %s12, 0
    %p32 = por %p30, %p31
    %p33 = scmp.ne.s32.totalorder %s22, %s25
    %p34 = scmp.eq.s32.totalorder %s17, 1
    %p35 = por %p33, %p34
    %p36 = scmp.ne.s32.totalorder %s25, %s26
    %p37 = scmp.eq.s32.totalorder %s17, 0
    %p38 = por %p36, %p37
    %p39 = scmp.ne.s32.totalorder %s25, %s26
    %p40 = scmp.eq.s32.totalorder %s18, 1
    %p41 = por %p39, %p40
    %p43 = scmp.ne.s32.totalorder %s26, %s42
    %p44 = scmp.eq.s32.totalorder %s18, 0
    %p45 = por %p43, %p44
    %s46 = ssub.s32 %s12, %s19
    %p47 = scmp.eq.s32.totalorder %s46, 0
    %s49 = sadd.s32 %s48, 1
    %s50 = scalar_select %p47, %s48, %s49
    %p53 = pneg %p47
    %p54 = scmp.eq.s32.totalorder %s12, 1
    %p55 = por %p53, %p54
    %p56 = scmp.ne.s32.totalorder %s48, %s51
    %p57 = scmp.eq.s32.totalorder %s12, 0
    %p58 = por %p56, %p57
    %p59 = scmp.ne.s32.totalorder %s48, %s51
    %p60 = scmp.eq.s32.totalorder %s17, 1
    %p61 = por %p59, %p60
    %p62 = scmp.ne.s32.totalorder %s51, %s52
    %p63 = scmp.eq.s32.totalorder %s17, 0
    %p64 = por %p62, %p63
    %p65 = scmp.ne.s32.totalorder %s51, %s52
    %p66 = scmp.eq.s32.totalorder %s18, 1
    %p67 = por %p65, %p66
    %p69 = scmp.ne.s32.totalorder %s52, %s68
    %p70 = scmp.eq.s32.totalorder %s18, 0
    %p71 = por %p69, %p70
    %s73 = sadd.s32 %s72, 1
    %p76 = scmp.eq.s32.totalorder %s12, 1
    %p77 = scmp.ne.s32.totalorder %s72, %s74
    %p78 = scmp.eq.s32.totalorder %s12, 0
    %p79 = por %p77, %p78
    %p80 = scmp.ne.s32.totalorder %s72, %s74
    %p81 = scmp.eq.s32.totalorder %s17, 1
    %p82 = por %p80, %p81
    %p83 = scmp.ne.s32.totalorder %s74, %s75
    %p84 = scmp.eq.s32.totalorder %s17, 0
    %p85 = por %p83, %p84
    %p86 = scmp.ne.s32.totalorder %s74, %s75
    %p87 = scmp.eq.s32.totalorder %s18, 1
    %p88 = por %p86, %p87
    %p90 = scmp.ne.s32.totalorder %s75, %s89
    %p91 = scmp.eq.s32.totalorder %s18, 0
    %p92 = por %p90, %p91
    %s94 = sadd.s32 %s93, 1
    %p97 = scmp.eq.s32.totalorder %s12, 1
    %p98 = scmp.ne.s32.totalorder %s93, %s95
    %p99 = scmp.eq.s32.totalorder %s12, 0
    %p100 = por %p98, %p99
    %p101 = scmp.ne.s32.totalorder %s93, %s95
    %p102 = scmp.eq.s32.totalorder %s17, 1
    %p103 = por %p101, %p102
    %p104 = scmp.ne.s32.totalorder %s95, %s96
    %p105 = scmp.eq.s32.totalorder %s17, 0
    %p106 = por %p104, %p105
    %p107 = scmp.ne.s32.totalorder %s95, %s96
    %p108 = scmp.eq.s32.totalorder %s18, 1
    %p109 = por %p107, %p108
    %p111 = scmp.ne.s32.totalorder %s96, %s110
    %p112 = scmp.eq.s32.totalorder %s18, 0
    %p113 = por %p111, %p112
    %s115 = sadd.s32 %s114, 1
    %p118 = scmp.eq.s32.totalorder %s12, 1
    %p119 = scmp.ne.s32.totalorder %s114, %s116
    %p120 = scmp.eq.s32.totalorder %s12, 0
    %p121 = por %p119, %p120
    %p122 = scmp.ne.s32.totalorder %s114, %s116
    %p123 = scmp.eq.s32.totalorder %s17, 1
    %p124 = por %p122, %p123
    %p125 = scmp.ne.s32.totalorder %s116, %s117
    %p126 = scmp.eq.s32.totalorder %s17, 0
    %p127 = por %p125, %p126
    %p128 = scmp.ne.s32.totalorder %s116, %s117
    %p129 = scmp.eq.s32.totalorder %s18, 1
    %p130 = por %p128, %p129
    %p132 = scmp.ne.s32.totalorder %s117, %s131
    %p133 = scmp.eq.s32.totalorder %s18, 0
    %p134 = por %p132, %p133
    %s136 = sadd.s32 %s135, 1
    %p139 = scmp.eq.s32.totalorder %s12, 1
    %p140 = scmp.ne.s32.totalorder %s135, %s137
    %p141 = scmp.eq.s32.totalorder %s12, 0
    %p142 = por %p140, %p141
    %p143 = scmp.ne.s32.totalorder %s135, %s137
    %p144 = scmp.eq.s32.totalorder %s17, 1
    %p145 = por %p143, %p144
    %p146 = scmp.ne.s32.totalorder %s137, %s138
    %p147 = scmp.eq.s32.totalorder %s17, 0
    %p148 = por %p146, %p147
    %p149 = scmp.ne.s32.totalorder %s137, %s138
    %p150 = scmp.eq.s32.totalorder %s18, 1
    %p151 = por %p149, %p150
    %p153 = scmp.ne.s32.totalorder %s138, %s152
    %p154 = scmp.eq.s32.totalorder %s18, 0
    %p155 = por %p153, %p154
    %s156 = ssub.s32 %s12, %s19
    %p157 = scmp.eq.s32.totalorder %s156, 0
    %s159 = sadd.s32 %s158, 1
    %s160 = scalar_select %p157, %s158, %s159
    %p163 = pneg %p157
    %p164 = scmp.eq.s32.totalorder %s12, 1
    %p165 = por %p163, %p164
    %p166 = scmp.ne.s32.totalorder %s158, %s161
    %p167 = scmp.eq.s32.totalorder %s12, 0
    %p168 = por %p166, %p167
    %p169 = scmp.ne.s32.totalorder %s158, %s161
    %p170 = scmp.eq.s32.totalorder %s17, 1
    %p171 = por %p169, %p170
    %p172 = scmp.ne.s32.totalorder %s161, %s162
    %p173 = scmp.eq.s32.totalorder %s17, 0
    %p174 = por %p172, %p173
    %p175 = scmp.ne.s32.totalorder %s161, %s162
    %p176 = scmp.eq.s32.totalorder %s18, 1
    %p177 = por %p175, %p176
    %p179 = scmp.ne.s32.totalorder %s162, %s178
    %p180 = scmp.eq.s32.totalorder %s18, 0
    %p181 = por %p179, %p180
    %p182 = scmp.le.s32.totalorder 1, %s12
    %p183 = scmp.lt.s32.totalorder %s12, 3
    %p184 = pnand %p182, %p183
    %p185 = pneg %p184
    // Predicated region
    $region9: #{gcn_forward.1} parent=5 // pred_check
      _
    $region10: #{gcn_forward.1} parent=5 // pred_check_branch
      %187 = sbr.rel (%p184) target = $region12
    $region11: #{gcn_forward.1} parent=5 // pred_region
      %s188 = ssub.s32 %s12, 1
      // Predicated region
      $region13: #{gcn_forward.1} parent=11 // pred_check
        %p189 = pneg %p85
      $region14: #{gcn_forward.1} parent=11 // pred_check_branch
        %191 = sbr.rel (%p189) target = $region16
      $region15: #{gcn_forward.1} parent=11 // pred_region
        _
      $region16: #{gcn_forward.1} parent=11 // pred_fallthru
        _
      // Predicated region
      $region17: #{gcn_forward.1} parent=11 // pred_check
        %p192 = pneg %p106
      $region18: #{gcn_forward.1} parent=11 // pred_check_branch
        %194 = sbr.rel (%p192) target = $region20
      $region19: #{gcn_forward.1} parent=11 // pred_region
        _
      $region20: #{gcn_forward.1} parent=11 // pred_fallthru
        _
      // Predicated region
      $region21: #{gcn_forward.1} parent=11 // pred_check
        %p195 = pneg %p127
      $region22: #{gcn_forward.1} parent=11 // pred_check_branch
        %197 = sbr.rel (%p195) target = $region24
      $region23: #{gcn_forward.1} parent=11 // pred_region
        _
      $region24: #{gcn_forward.1} parent=11 // pred_fallthru
        _
      // Predicated region
      $region25: #{gcn_forward.1} parent=11 // pred_check
        %p198 = pneg %p148
      $region26: #{gcn_forward.1} parent=11 // pred_check_branch
        %200 = sbr.rel (%p198) target = $region28
      $region27: #{gcn_forward.1} parent=11 // pred_region
        _
      $region28: #{gcn_forward.1} parent=11 // pred_fallthru
        _
    $region12: #{gcn_forward.1} parent=5 // pred_fallthru
      _
    %p201 = scmp.lt.s32.totalorder %s12, 2
    // Predicated region
    $region29: #{gcn_forward.1} parent=5 // pred_check
      %p202 = pneg %p201
    $region30: #{gcn_forward.1} parent=5 // pred_check_branch
      %204 = sbr.rel (%p202) target = $region32
    $region31: #{gcn_forward.1} parent=5 // pred_region
      // Predicated region
      $region33: #{gcn_forward.1} parent=31 // pred_check
        %p205 = pneg %p32
      $region34: #{gcn_forward.1} parent=31 // pred_check_branch
        %207 = sbr.rel (%p205) target = $region36
      $region35: #{gcn_forward.1} parent=31 // pred_region
        %p208 = scmp.lt.s32.totalorder %s12, 1
        %s209 = scalar_select %p208, %s12, 1
        %s210 = smul.addr %s209, 2
        %s211 = smul.addr %s210, 4
        %s212 = scalar_lea.vmem %s0, %s211
      $region36: #{gcn_forward.1} parent=31 // pred_fallthru
        _
      // Predicated region
      $region37: #{gcn_forward.1} parent=31 // pred_check
        %p213 = pneg %p58
      $region38: #{gcn_forward.1} parent=31 // pred_check_branch
        %215 = sbr.rel (%p213) target = $region40
      $region39: #{gcn_forward.1} parent=31 // pred_region
        %p216 = scmp.lt.s32.totalorder %s12, 1
        %s217 = scalar_select %p216, %s12, 1
        %s218 = smul.addr %s217, 2
        %s219 = smul.addr %s218, 8
        %s220 = scalar_lea.vmem %s1, %s219
      $region40: #{gcn_forward.1} parent=31 // pred_fallthru
        _
    $region32: #{gcn_forward.1} parent=5 // pred_fallthru
      _
    %p221 = scmp.le.s32.totalorder 1, %s12
    %p222 = scmp.lt.s32.totalorder %s12, 3
    %p223 = pnand %p221, %p222
    %p224 = pneg %p223
    // Predicated region
    $region41: #{gcn_forward.1} parent=5 // pred_check
      _
    $region42: #{gcn_forward.1} parent=5 // pred_check_branch
      %226 = sbr.rel (%p223) target = $region44
    $region43: #{gcn_forward.1} parent=5 // pred_region
      %s227 = ssub.s32 %s12, 1
      %p228 = scmp.lt.s32.totalorder %s17, 1
      %s229 = scalar_select %p228, %s17, 1
      %s230 = smul.addr %s229, 2
      %s231 = smul.addr %s230, 4
      %s232 = scalar_lea.vmem %s0, %s231
      %p233 = pneg %p38
      %p234 = pneg %p35
      %p235 = scmp.lt.s32.totalorder %s17, 1
      %s236 = scalar_select %p235, %s17, 1
      %s237 = smul.addr %s236, 2
      %s238 = smul.addr %s237, 8
      %s239 = scalar_lea.vmem %s1, %s238
      %p240 = pneg %p64
      %p241 = pneg %p61
      %p242 = pneg %p85
      %p243 = pneg %p82
      %p244 = pneg %p106
      %p245 = pneg %p103
      %p246 = pneg %p127
      %p247 = pneg %p124
      %p248 = pneg %p148
      %p249 = pneg %p145
      %p250 = pneg %p174
      %p251 = pneg %p171
      %p252 = scmp.lt.s32.totalorder %s17, 1
      %s253 = scalar_select %p252, %s17, 1
      %s254 = smul.addr %s253, 2
      %s255 = smul.addr %s254, 8
      %s256 = scalar_lea.vmem %s6, %s255
      %p257 = scmp.lt.s32.totalorder %s17, 1
      %s258 = scalar_select %p257, %s17, 1
      %s259 = smul.addr %s258, 2
      %s260 = smul.addr %s259, 4
      %s261 = scalar_lea.vmem %s0, %s260
      %p262 = scmp.lt.s32.totalorder %s17, 1
      %s263 = scalar_select %p262, %s17, 1
      %s264 = smul.addr %s263, 2
      %s265 = smul.addr %s264, 8
      %s266 = scalar_lea.vmem %s1, %s265
      %p267 = scmp.lt.s32.totalorder %s17, 1
      %s268 = scalar_select %p267, %s17, 1
      %s269 = smul.addr %s268, 2
      %s270 = smul.addr %s269, 8
      %s271 = scalar_lea.vmem %s6, %s270
      %v272 = vld [vmem:[%s261] sm:$0xf]
      %v273 = vld [vmem:[%s261 + $0x4] sm:$0xf]
      %v274 = vunpack.c.l.bf16 %v272
      %v275 = vunpack.c.l.bf16 %v273
      %v276 = vld [vmem:[%s266] sm:$0xff]
      %v277 = vld [vmem:[%s266 + $0x8] sm:$0xff]
      %vm278 = vcmask 130048
      %v279 = vsel %vm278, %v274, 0.0
      %280 = vadd.xlane.f32.xlu0 %v279
      %v281 = vpop.xlane.xlu0 %280
      %v282 = vsel %vm278, %v275, 0.0
      %283 = vadd.xlane.f32.xlu0 %v282
      %v284 = vpop.xlane.xlu0 %283
      %v285 = vadd.f32 %v281, 1.0
      %v286 = vadd.f32 %v284, 1.0
      %vm287 = vcmp.gt.f32.partialorder %v285, 0.0
      %vm288 = vcmp.gt.f32.partialorder %v286, 0.0
      %v289 = vmax.f32 %v285, 1e-30
      %v290 = vmax.f32 %v286, 1e-30
      %v291 = vrsqrt.pop %v289
      %v292 = vmul.f32 %v291, %v289
      %v293 = vmul.f32 %v292, %v291
      %v294 = vmul.f32 0.5, %v293
      %v295 = vsub.f32 1.5, %v294
      %v296 = vmul.f32 %v291, %v295
      %vm297 = vweird.f32 %v289
      %vm298 = vweird.f32 %v291
      %vm299 = vmor %vm297, %vm298
      %v300 = vsel %vm299, %v291, %v296
      %v301 = vrsqrt.pop %v290
      %v302 = vmul.f32 %v301, %v290
      %v303 = vmul.f32 %v302, %v301
      %v304 = vmul.f32 0.5, %v303
      %v305 = vsub.f32 1.5, %v304
      %v306 = vmul.f32 %v301, %v305
      %vm307 = vweird.f32 %v290
      %vm308 = vweird.f32 %v301
      %vm309 = vmor %vm307, %vm308
      %v310 = vsel %vm309, %v301, %v306
      %v311 = vsel %vm287, %v300, 0.0
      %v312 = vsel %vm288, %v310, 0.0
      %v313 = vmul.f32 %v311, %v311
      %v314 = vmul.f32 %v312, %v312
      %v315 = vmul.f32 %v311, %v274
      %v316 = vmul.f32 %v312, %v275
      %v319 = vlaneseq
      %v320 = vand.u32 %v319, 127
      %v321 = vperm.slane %v311, %v320
      %v322 = vadd.s32 %v320, 4294967288
      %v323 = vperm.slane %v312, %v322
      %vm324 = vcmask 130112
      %v325 = vsel %vm324, %v323, %v321
      %vm326 = vcmask 1042434
      %v327 = vsel %vm326, %v325, %v325
      %vm328 = vcmask 1043459
      %v329 = vsel %vm328, %v325, %v327
      %vm330 = vcmask 1044484
      %v331 = vsel %vm330, %v325, %v329
      %vm332 = vcmask 1045509
      %v333 = vsel %vm332, %v325, %v331
      %vm334 = vcmask 1046534
      %v335 = vsel %vm334, %v325, %v333
      %vm336 = vcmask 1047559
      %v337 = vsel %vm336, %v325, %v335
      %v339 = vmul.f32 %v315, %v337
      %v340 = vmul.f32 %v316, %v337
      %v341 = vmul.f32 %v313, %v276
      %v342 = vmul.f32 %v314, %v277
      %v344 = vsel %vm278, %v339, 0
      %v347 = vsel %vm278, %v340, 0
      %349 = vmatpush.msra.mxu0 0.0
      %350 = vmatpush.msra.mxu0 0.0
      %351 = vmatpush.msra.mxu0 0.0
      %352 = vmatpush.msra.mxu0 0.0
      %353 = vmatpush.msra.mxu0 0.0
      %354 = vmatpush.msra.mxu0 0.0
      %355 = vmatpush.msra.mxu0 0.0
      %356 = vmatpush.msra.mxu0 0.0
      %357 = vmatpush.msra.mxu0 0.0
      %358 = vmatpush.msra.mxu0 0.0
      %359 = vmatpush.msra.mxu0 0.0
      %360 = vmatpush.msra.mxu0 0.0
      %361 = vmatpush.msra.mxu0 0.0
      %362 = vmatpush.msra.mxu0 0.0
      %363 = vmatpush.msra.mxu0 %v277
      %364 = vmatpush.msra.mxu0 %v276
      %365 = vmatmul.f32.gmra.mxu0 %v344
      %v366 = vpop.f32.mrf.mxu0
      %v367 = vadd.f32 %v341, %v366
      %368 = vmatmul.f32.gmra.mxu0 %v347
      %v369 = vpop.f32.mrf.mxu0
      %v370 = vadd.f32 %v342, %v369
      %371 = vdwg.mxu0
      %v372 = vld [vmem:[%s2] sm:$0xff]
      %v373 = vld [vmem:[%s3] sm:$0x1]
      %v375 = vperm.slane %v373, 0
      %vm377 = vcmask 64512
      %v379 = vsel %vm377, %v367, 0
      %v382 = vsel %vm377, %v370, 0
      %384 = vmatpush.msra.mxu0 0.0
      %385 = vmatpush.msra.mxu0 0.0
      %386 = vmatpush.msra.mxu0 0.0
      %387 = vmatpush.msra.mxu0 0.0
      %388 = vmatpush.msra.mxu0 0.0
      %389 = vmatpush.msra.mxu0 0.0
      %390 = vmatpush.msra.mxu0 0.0
      %391 = vmatpush.msra.mxu0 0.0
      %392 = vmatpush.msra.mxu0 0.0
      %393 = vmatpush.msra.mxu0 0.0
      %394 = vmatpush.msra.mxu0 0.0
      %395 = vmatpush.msra.mxu0 0.0
      %396 = vmatpush.msra.mxu0 0.0
      %397 = vmatpush.msra.mxu0 0.0
      %398 = vmatpush.msra.mxu0 0.0
      %399 = vmatpush.msra.mxu0 %v372
      %400 = vmatmul.f32.gmra.mxu0 %v379
      %v401 = vpop.f32.mrf.mxu0
      %v402 = vadd.f32 %v375, %v401
      %403 = vmatmul.f32.gmra.mxu0 %v382
      %v404 = vpop.f32.mrf.mxu0
      %v405 = vadd.f32 %v375, %v404
      %406 = vdwg.mxu0
      %v407 = vmax.f32 %v402, 0.0
      %v408 = vmax.f32 %v405, 0.0
      %v409 = vmul.f32 %v313, %v407
      %v410 = vmul.f32 %v314, %v408
      %411 = vmatpush.msra.mxu0 0.0
      %412 = vmatpush.msra.mxu0 0.0
      %413 = vmatpush.msra.mxu0 0.0
      %414 = vmatpush.msra.mxu0 0.0
      %415 = vmatpush.msra.mxu0 0.0
      %416 = vmatpush.msra.mxu0 0.0
      %417 = vmatpush.msra.mxu0 0.0
      %418 = vmatpush.msra.mxu0 0.0
      %419 = vmatpush.msra.mxu0 0.0
      %420 = vmatpush.msra.mxu0 0.0
      %421 = vmatpush.msra.mxu0 0.0
      %422 = vmatpush.msra.mxu0 0.0
      %423 = vmatpush.msra.mxu0 0.0
      %424 = vmatpush.msra.mxu0 0.0
      %425 = vmatpush.msra.mxu0 %v408
      %426 = vmatpush.msra.mxu0 %v407
      %427 = vmatmul.f32.gmra.mxu0 %v344
      %v428 = vpop.f32.mrf.mxu0
      %v429 = vadd.f32 %v409, %v428
      %430 = vmatmul.f32.gmra.mxu0 %v347
      %v431 = vpop.f32.mrf.mxu0
      %v432 = vadd.f32 %v410, %v431
      %433 = vdwg.mxu0
      %v434 = vld [vmem:[%s4] sm:$0xff]
      %v435 = vld [vmem:[%s4 + $0x8] sm:$0xff]
      %v436 = vld [vmem:[%s4 + $0x10] sm:$0xff]
      %v437 = vld [vmem:[%s4 + $0x18] sm:$0xff]
      %v438 = vld [vmem:[%s5] sm:$0x1]
      %v440 = vperm.slane %v438, 0
      %vm442 = vcmask 261120
      %v444 = vsel %vm442, %v429, 0
      %v447 = vsel %vm442, %v432, 0
      %449 = vmatpush.msra.mxu0 0.0
      %450 = vmatpush.msra.mxu0 0.0
      %451 = vmatpush.msra.mxu0 0.0
      %452 = vmatpush.msra.mxu0 0.0
      %453 = vmatpush.msra.mxu0 0.0
      %454 = vmatpush.msra.mxu0 0.0
      %455 = vmatpush.msra.mxu0 0.0
      %456 = vmatpush.msra.mxu0 0.0
      %457 = vmatpush.msra.mxu0 0.0
      %458 = vmatpush.msra.mxu0 0.0
      %459 = vmatpush.msra.mxu0 0.0
      %460 = vmatpush.msra.mxu0 0.0
      %461 = vmatpush.msra.mxu0 %v437
      %462 = vmatpush.msra.mxu0 %v436
      %463 = vmatpush.msra.mxu0 %v435
      %464 = vmatpush.msra.mxu0 %v434
      %465 = vmatmul.f32.gmra.mxu0 %v444
      %v466 = vpop.f32.mrf.mxu0
      %v467 = vadd.f32 %v440, %v466
      %468 = vmatmul.f32.gmra.mxu0 %v447
      %v469 = vpop.f32.mrf.mxu0
      %v470 = vadd.f32 %v440, %v469
      %471 = vdwg.mxu0
      %472 = vst.msk [vmem:[%s271] sm:$0xff] %vm377, %v467
      %473 = vst.msk [vmem:[%s271 + $0x8] sm:$0xff] %vm377, %v470
      %p474 = scmp.lt.s32.totalorder %s17, 1
      %s475 = scalar_select %p474, %s17, 1
      %s476 = smul.addr %s475, 2
      %s477 = smul.addr %s476, 8
      %s478 = scalar_lea.vmem %s6, %s477
      // Predicated region
      $region45: #{gcn_forward.1} parent=43 // pred_check
        %p479 = pneg %p171
      $region46: #{gcn_forward.1} parent=43 // pred_check_branch
        %481 = sbr.rel (%p479) target = $region48
      $region47: #{gcn_forward.1} parent=43 // pred_region
        _
      $region48: #{gcn_forward.1} parent=43 // pred_fallthru
        _
    $region44: #{gcn_forward.1} parent=5 // pred_fallthru
      _
    %p482 = scmp.le.s32.totalorder 2, %s12
    // Predicated region
    $region49: #{gcn_forward.1} parent=5 // pred_check
      %p483 = pneg %p482
    $region50: #{gcn_forward.1} parent=5 // pred_check_branch
      %485 = sbr.rel (%p483) target = $region52
    $region51: #{gcn_forward.1} parent=5 // pred_region
      %s486 = ssub.s32 %s12, 2
      // Predicated region
      $region53: #{gcn_forward.1} parent=51 // pred_check
        %p487 = pneg %p177
      $region54: #{gcn_forward.1} parent=51 // pred_check_branch
        %489 = sbr.rel (%p487) target = $region56
      $region55: #{gcn_forward.1} parent=51 // pred_region
        %p490 = scmp.lt.s32.totalorder %s18, 1
        %s491 = scalar_select %p490, %s18, 1
        %s492 = smul.addr %s491, 2
        %s493 = smul.addr %s492, 8
        %s494 = scalar_lea.vmem %s6, %s493
      $region56: #{gcn_forward.1} parent=51 // pred_fallthru
        _
    $region52: #{gcn_forward.1} parent=5 // pred_fallthru
      _
  $region6: #{gcn_forward.1} parent=0 // loop_footer
    %s16 = sadd.s32 1, %s12
  $region7: #{gcn_forward.1} parent=0 // loop_footer_branch
    %11 = sbr.rel target = $region3
  $region8: #{gcn_forward.1} parent=0 // loop_exit
    _

</llo_original>
